<compile_context>
chip_gen: v5e
topology: v5e:2x2
jax: 0.10.0
libtpu: 0.0.40
codegen_flags: <defaults>
</compile_context>

<pallas_src>
import jax
import jax.numpy as jnp
from jax.experimental import pallas as pl
from jax.experimental.pallas import tpu as pltpu

FEAT = 128             # lane-aligned feature padding (all layer widths <= 128)
BIAS_ROW = FEAT        # sublane index of the bias row inside each packed slab slice
SLAB_ROWS = FEAT + 16  # 128 W sublanes + 16 pad sublanes (bias at sublane 128);
                       # multiple of 16 keeps bf16 (16,128) sublane packing aligned.


# ---------------------------------------------------------------------------
# Parameter construction (deterministic, PyTorch nn.Linear-style uniform init)
# ---------------------------------------------------------------------------
def init_selu_linear_params(key, num_in=2, num_hidden=20, num_layers=3, num_classes=2):
    """Returns list of (W, b) with W shaped (in_features, out_features)."""
    dims = [num_in] + [num_hidden] * num_layers
    params = []
    for i in range(num_layers):
        key, kw, kb = jax.random.split(key, 3)
        fan_in, fan_out = dims[i], dims[i + 1]
        bound = 1.0 / jnp.sqrt(fan_in)
        w = jax.random.uniform(kw, (fan_in, fan_out), jnp.float32, -bound, bound)
        b = jax.random.uniform(kb, (fan_out,), jnp.float32, -bound, bound)
        params.append((w, b))
    # classifier
    key, kw, kb = jax.random.split(key, 3)
    fan_in = dims[-1]
    bound = 1.0 / jnp.sqrt(fan_in)
    wc = jax.random.uniform(kw, (fan_in, num_classes), jnp.float32, -bound, bound)
    bc = jax.random.uniform(kb, (num_classes,), jnp.float32, -bound, bound)
    params.append((wc, bc))
    return params


def pack_params(params):
    """One-time packing: list of (W, b) -> (L+1, 144, 128) bfloat16 slab.

    Sublanes [0:128) of slice i hold W_i (zero-padded to 128x128); sublane 128
    holds b_i (zero-padded to 128 lanes); sublanes 129..143 are zero padding.
    Done once, outside the per-call path.  bf16 halves the slab DMA / VMEM cost;
    the padded zero entries are exact in bf16.
    """
    slices = []
    for w, b in params:
        s = jnp.zeros((SLAB_ROWS, FEAT), jnp.float32)
        s = s.at[: w.shape[0], : w.shape[1]].set(w.astype(jnp.float32))
        s = s.at[BIAS_ROW, : b.shape[0]].set(b.astype(jnp.float32))
        slices.append(s)
    return jnp.stack(slices).astype(jnp.bfloat16)  # (L+1, 144, 128)


# ---------------------------------------------------------------------------
# Activations (defined with plain jnp so they lower cleanly inside the kernel)
# ---------------------------------------------------------------------------
def _relu(x):
    return jnp.maximum(x, 0.0)


def _selu(x):
    alpha = 1.6732632423543772
    scale = 1.0507009873554805
    return scale * jnp.where(x > 0, x, alpha * (jnp.exp(x) - 1.0))


# ---------------------------------------------------------------------------
# Pallas kernel + wrapper
# ---------------------------------------------------------------------------
def _make_mlp_kernel(num_hidden_layers, num_in, num_classes, act_fn):
    """Kernel: x_tile -> [x@W_i + b_i -> act]*L -> x@Wc + bc, fully fused."""

    def kernel(x_ref, slab_ref, o_ref):
        x = x_ref[...].astype(jnp.float32)                       # (TM, num_in)
        tm = x.shape[0]

        # ---- Layer 0 ------------------------------------------------------
        b0 = slab_ref[0, BIAS_ROW:BIAS_ROW + 1, :].astype(jnp.float32)   # (1, 128)
        if num_in <= 16:
            # num_in is tiny (default 2): VPU broadcast-MAC over the real input
            # columns — no padded matmul, no in-kernel zero-extension of x.
            nrows = min(FEAT, ((num_in + 15) // 16) * 16)        # aligned sublane slice
            w0 = slab_ref[0, 0:nrows, :].astype(jnp.float32)     # (nrows, 128)
            h = jnp.broadcast_to(b0, (tm, FEAT))
            for j in range(num_in):                              # unrolled, static j
                h = h + x[:, j:j + 1] * w0[j:j + 1, :]
        else:
            # Fallback for wide inputs: zero-extend in-vreg and use the MXU.
            xp = jnp.pad(x, ((0, 0), (0, FEAT - num_in))).astype(jnp.bfloat16)
            w0 = slab_ref[0, 0:FEAT, :]                          # (128, 128) bf16
            h = jnp.dot(xp, w0, preferred_element_type=jnp.float32) + b0
        h = act_fn(h)

        # ---- Hidden layers 1..L-1: bf16 MXU matmuls, f32 accumulation ------
        for i in range(1, num_hidden_layers):                    # unrolled, static i
            w = slab_ref[i, 0:FEAT, :]                           # (128, 128) bf16
            b = slab_ref[i, BIAS_ROW:BIAS_ROW + 1, :].astype(jnp.float32)
            h = act_fn(jnp.dot(h.astype(jnp.bfloat16), w,
                               preferred_element_type=jnp.float32) + b)

        # ---- Classifier: store only the real num_classes lanes -------------
        wc = slab_ref[num_hidden_layers, 0:FEAT, :]
        bc = slab_ref[num_hidden_layers, BIAS_ROW:BIAS_ROW + 1, :].astype(jnp.float32)
        logits = jnp.dot(h.astype(jnp.bfloat16), wc,
                         preferred_element_type=jnp.float32) + bc   # (TM, 128)
        o_ref[...] = logits[:, :num_classes]                        # narrow store

    return kernel


def selu_linear_forward(x, packed_slab, num_classes, *, tm=2048, activation="relu"):
    """x: (B, num_in) float32. packed_slab: (L+1, 144, 128) bf16 from pack_params()."""
    B, num_in = x.shape
    num_hidden_layers = packed_slab.shape[0] - 1
    assert num_hidden_layers >= 1
    assert num_in <= FEAT and num_classes <= FEAT

    x = x.astype(jnp.float32)

    # Row tile: multiple of 8, capped at half the (8-rounded) batch so the grid
    # has >= 2 steps whenever B >= 16 (v7x: both TensorCores get work; also
    # enables DMA/compute overlap), then capped by tm.  No wrapper-side padding:
    # Pallas masks the partial last row-block when TM does not divide B.
    b_rounded = max(8, ((B + 7) // 8) * 8)
    half = max(8, (b_rounded // 2 // 8) * 8)
    TM = max(8, (min(tm, half) // 8) * 8)
    grid = pl.cdiv(B, TM)

    act_fn = _selu if activation == "selu" else _relu   # module default: nn.ReLU

    kernel = _make_mlp_kernel(num_hidden_layers, num_in, num_classes, act_fn)

    return pl.pallas_call(
        kernel,
        out_shape=jax.ShapeDtypeStruct((B, num_classes), jnp.float32),
        grid=(grid,),
        in_specs=[
            # x at its natural width (last block dim == full array dim -> legal).
            pl.BlockSpec((TM, num_in), lambda i: (i, 0)),
            # Weight slab: constant index_map -> fetched once, VMEM-resident.
            pl.BlockSpec(packed_slab.shape, lambda i: (0, 0, 0)),
        ],
        out_specs=pl.BlockSpec((TM, num_classes), lambda i: (i, 0)),
        compiler_params=pltpu.CompilerParams(
            dimension_semantics=("parallel",),   # batch tiles independent -> shard TCs
            vmem_limit_bytes=32 * 1024 * 1024,   # footprint is a few MB; safe on all gens
        ),
    )(x, packed_slab)


# ---------------------------------------------------------------------------
# Reference (plain JAX, f32) for correctness check
# ---------------------------------------------------------------------------
def selu_linear_ref(x, params, activation="relu"):
    act = _selu if activation == "selu" else _relu
    h = x.astype(jnp.float32)
    for (w, b) in params[:-1]:
        h = act(h @ w + b)
    wc, bc = params[-1]
    return h @ wc + bc


if __name__ == "__main__":
    # Module defaults: num_in=2, num_hidden=20, num_layers=3, num_classes=2, activation=nn.ReLU.
    NUM_IN, NUM_HIDDEN, NUM_LAYERS, NUM_CLASSES = 2, 20, 3, 2

    key = jax.random.PRNGKey(0)
    params = init_selu_linear_params(key, NUM_IN, NUM_HIDDEN, NUM_LAYERS, NUM_CLASSES)
    packed = jax.block_until_ready(pack_params(params))   # one-time pack, off the hot path

    # bf16 MXU operands vs an f32 reference -> relaxed tolerance (typical err ~0.5%).
    TOL = dict(atol=5e-2, rtol=5e-2)

    # Small batch: single grid step (block == full array), default ReLU.
    key, kx = jax.random.split(key)
    x_small = jax.random.normal(kx, (8, NUM_IN), jnp.float32)
    out_small = jax.block_until_ready(selu_linear_forward(x_small, packed, NUM_CLASSES))
    ref_small = selu_linear_ref(x_small, params)
    assert out_small.shape == (8, NUM_CLASSES), out_small.shape
    assert jnp.allclose(out_small, ref_small, **TOL), float(jnp.max(jnp.abs(out_small - ref_small)))

    # Ragged batch: exercises the multi-step parallel grid, the masked partial
    # last block (300 rows, TM=152 -> grid=2) and the resident-weight spec.
    key, kx = jax.random.split(key)
    x_big = jax.random.normal(kx, (300, NUM_IN), jnp.float32)
    out_big = jax.block_until_ready(selu_linear_forward(x_big, packed, NUM_CLASSES))
    ref_big = selu_linear_ref(x_big, params)
    assert out_big.shape == (300, NUM_CLASSES), out_big.shape
    assert jnp.allclose(out_big, ref_big, **TOL), float(jnp.max(jnp.abs(out_big - ref_big)))

    # SELU activation path (EUP exp + VPU select).
    key, kx = jax.random.split(key)
    x_selu = jax.random.normal(kx, (64, NUM_IN), jnp.float32)
    out_selu = jax.block_until_ready(
        selu_linear_forward(x_selu, packed, NUM_CLASSES, activation="selu"))
    ref_selu = selu_linear_ref(x_selu, params, activation="selu")
    assert out_selu.shape == (64, NUM_CLASSES), out_selu.shape
    assert jnp.allclose(out_selu, ref_selu, **TOL), float(jnp.max(jnp.abs(out_selu - ref_selu)))

    print("KERNEL_OK")
</pallas_src>

<mosaic_0001>
module attributes {stable_mosaic.version = 11 : i64} {
  func.func @kernel(%arg0: i32, %arg1: memref<8x2xf32, #tpu.memory_space<vmem>>, %arg2: memref<4x144x128xbf16, #tpu.memory_space<vmem>>, %arg3: memref<8x2xf32, #tpu.memory_space<vmem>>) attributes {dimension_semantics = [#tpu.dimension_semantics<parallel>], iteration_bounds = array<i64: 1>, scalar_prefetch = 0 : i64, scratch_operands = 0 : i64, tpu.core_type = #tpu.core_type<tc>, window_params = [{transform_indices = @transform_0, window_bounds = array<i64: 8, 2>}, {pipeline_mode = #tpu.pipeline_mode<synchronous>, transform_indices = @transform_1, window_bounds = array<i64: 4, 144, 128>}, {transform_indices = @transform_2, window_bounds = array<i64: 8, 2>}]} {
    %c0 = arith.constant 0 : index
    %c0_0 = arith.constant 0 : index
    %0 = vector.load %arg1[%c0, %c0_0] : memref<8x2xf32, #tpu.memory_space<vmem>>, vector<8x2xf32>
    %c0_1 = arith.constant 0 : index
    %c128 = arith.constant 128 : index
    %c0_2 = arith.constant 0 : index
    %1 = vector.load %arg2[%c0_1, %c128, %c0_2] : memref<4x144x128xbf16, #tpu.memory_space<vmem>>, vector<1x1x128xbf16>
    %2 = vector.shape_cast %1 : vector<1x1x128xbf16> to vector<1x128xbf16>
    %3 = arith.extf %2 : vector<1x128xbf16> to vector<1x128xf32>
    %c0_3 = arith.constant 0 : index
    %c0_4 = arith.constant 0 : index
    %c0_5 = arith.constant 0 : index
    %4 = vector.load %arg2[%c0_3, %c0_4, %c0_5] : memref<4x144x128xbf16, #tpu.memory_space<vmem>>, vector<1x16x128xbf16>
    %5 = vector.shape_cast %4 : vector<1x16x128xbf16> to vector<16x128xbf16>
    %6 = arith.extf %5 : vector<16x128xbf16> to vector<16x128xf32>
    %7 = vector.shape_cast %3 : vector<1x128xf32> to vector<1x128xf32>
    %8 = vector.broadcast %7 : vector<1x128xf32> to vector<8x128xf32>
    %9 = vector.extract_strided_slice %0 {offsets = [0, 0], sizes = [8, 1], strides = [1, 1]} : vector<8x2xf32> to vector<8x1xf32>
    %10 = vector.extract_strided_slice %6 {offsets = [0, 0], sizes = [1, 128], strides = [1, 1]} : vector<16x128xf32> to vector<1x128xf32>
    %11 = vector.broadcast %9 : vector<8x1xf32> to vector<8x128xf32>
    %12 = vector.broadcast %10 : vector<1x128xf32> to vector<8x128xf32>
    %13 = arith.mulf %11, %12 : vector<8x128xf32>
    %14 = arith.addf %8, %13 : vector<8x128xf32>
    %15 = vector.extract_strided_slice %0 {offsets = [0, 1], sizes = [8, 1], strides = [1, 1]} : vector<8x2xf32> to vector<8x1xf32>
    %16 = vector.extract_strided_slice %6 {offsets = [1, 0], sizes = [1, 128], strides = [1, 1]} : vector<16x128xf32> to vector<1x128xf32>
    %17 = vector.broadcast %15 : vector<8x1xf32> to vector<8x128xf32>
    %18 = vector.broadcast %16 : vector<1x128xf32> to vector<8x128xf32>
    %19 = arith.mulf %17, %18 : vector<8x128xf32>
    %20 = arith.addf %14, %19 : vector<8x128xf32>
    %cst = arith.constant 0.000000e+00 : f32
    %21 = vector.broadcast %cst : f32 to vector<8x128xf32>
    %22 = arith.maximumf %20, %21 : vector<8x128xf32>
    %c1 = arith.constant 1 : index
    %c0_6 = arith.constant 0 : index
    %c0_7 = arith.constant 0 : index
    %23 = vector.load %arg2[%c1, %c0_6, %c0_7] : memref<4x144x128xbf16, #tpu.memory_space<vmem>>, vector<1x128x128xbf16>
    %24 = vector.shape_cast %23 : vector<1x128x128xbf16> to vector<128x128xbf16>
    %c1_8 = arith.constant 1 : index
    %c128_9 = arith.constant 128 : index
    %c0_10 = arith.constant 0 : index
    %25 = vector.load %arg2[%c1_8, %c128_9, %c0_10] : memref<4x144x128xbf16, #tpu.memory_space<vmem>>, vector<1x1x128xbf16>
    %26 = vector.shape_cast %25 : vector<1x1x128xbf16> to vector<1x128xbf16>
    %27 = arith.extf %26 : vector<1x128xbf16> to vector<1x128xf32>
    %28 = arith.truncf %22 : vector<8x128xf32> to vector<8x128xbf16>
    %cst_11 = arith.constant dense<0.000000e+00> : vector<8x128xf32>
    %29 = tpu.matmul %28, %24, %cst_11 {dimension_numbers = #tpu.dot_dimension_numbers<[1], [0], [0], [1], [0, 0, 1, 1], [], []>} : vector<8x128xbf16>, vector<128x128xbf16>, vector<8x128xf32> -> vector<8x128xf32>
    %30 = vector.broadcast %27 : vector<1x128xf32> to vector<8x128xf32>
    %31 = arith.addf %29, %30 : vector<8x128xf32>
    %cst_12 = arith.constant 0.000000e+00 : f32
    %32 = vector.broadcast %cst_12 : f32 to vector<8x128xf32>
    %33 = arith.maximumf %31, %32 : vector<8x128xf32>
    %c2 = arith.constant 2 : index
    %c0_13 = arith.constant 0 : index
    %c0_14 = arith.constant 0 : index
    %34 = vector.load %arg2[%c2, %c0_13, %c0_14] : memref<4x144x128xbf16, #tpu.memory_space<vmem>>, vector<1x128x128xbf16>
    %35 = vector.shape_cast %34 : vector<1x128x128xbf16> to vector<128x128xbf16>
    %c2_15 = arith.constant 2 : index
    %c128_16 = arith.constant 128 : index
    %c0_17 = arith.constant 0 : index
    %36 = vector.load %arg2[%c2_15, %c128_16, %c0_17] : memref<4x144x128xbf16, #tpu.memory_space<vmem>>, vector<1x1x128xbf16>
    %37 = vector.shape_cast %36 : vector<1x1x128xbf16> to vector<1x128xbf16>
    %38 = arith.extf %37 : vector<1x128xbf16> to vector<1x128xf32>
    %39 = arith.truncf %33 : vector<8x128xf32> to vector<8x128xbf16>
    %cst_18 = arith.constant dense<0.000000e+00> : vector<8x128xf32>
    %40 = tpu.matmul %39, %35, %cst_18 {dimension_numbers = #tpu.dot_dimension_numbers<[1], [0], [0], [1], [0, 0, 1, 1], [], []>} : vector<8x128xbf16>, vector<128x128xbf16>, vector<8x128xf32> -> vector<8x128xf32>
    %41 = vector.broadcast %38 : vector<1x128xf32> to vector<8x128xf32>
    %42 = arith.addf %40, %41 : vector<8x128xf32>
    %cst_19 = arith.constant 0.000000e+00 : f32
    %43 = vector.broadcast %cst_19 : f32 to vector<8x128xf32>
    %44 = arith.maximumf %42, %43 : vector<8x128xf32>
    %c3 = arith.constant 3 : index
    %c0_20 = arith.constant 0 : index
    %c0_21 = arith.constant 0 : index
    %45 = vector.load %arg2[%c3, %c0_20, %c0_21] : memref<4x144x128xbf16, #tpu.memory_space<vmem>>, vector<1x128x128xbf16>
    %46 = vector.shape_cast %45 : vector<1x128x128xbf16> to vector<128x128xbf16>
    %c3_22 = arith.constant 3 : index
    %c128_23 = arith.constant 128 : index
    %c0_24 = arith.constant 0 : index
    %47 = vector.load %arg2[%c3_22, %c128_23, %c0_24] : memref<4x144x128xbf16, #tpu.memory_space<vmem>>, vector<1x1x128xbf16>
    %48 = vector.shape_cast %47 : vector<1x1x128xbf16> to vector<1x128xbf16>
    %49 = arith.extf %48 : vector<1x128xbf16> to vector<1x128xf32>
    %50 = arith.truncf %44 : vector<8x128xf32> to vector<8x128xbf16>
    %cst_25 = arith.constant dense<0.000000e+00> : vector<8x128xf32>
    %51 = tpu.matmul %50, %46, %cst_25 {dimension_numbers = #tpu.dot_dimension_numbers<[1], [0], [0], [1], [0, 0, 1, 1], [], []>} : vector<8x128xbf16>, vector<128x128xbf16>, vector<8x128xf32> -> vector<8x128xf32>
    %52 = vector.broadcast %49 : vector<1x128xf32> to vector<8x128xf32>
    %53 = arith.addf %51, %52 : vector<8x128xf32>
    %54 = vector.extract_strided_slice %53 {offsets = [0, 0], sizes = [8, 2], strides = [1, 1]} : vector<8x128xf32> to vector<8x2xf32>
    %c0_26 = arith.constant 0 : index
    %c0_27 = arith.constant 0 : index
    %55 = vector.load %arg3[%c0_26, %c0_27] : memref<8x2xf32, #tpu.memory_space<vmem>>, vector<8x2xf32>
    tpu.vector_store %arg3[%c0_26, %c0_27], %54 {strides = array<i32>} : memref<8x2xf32, #tpu.memory_space<vmem>>, vector<8x2xf32>,
    return
  }
  func.func @transform_0(%arg0: i32) -> (i32, i32) {
    %c0_i32 = arith.constant 0 : i32
    %c0_i32_0 = arith.constant 0 : i32
    return %arg0, %c0_i32 : i32, i32
  }
  func.func @transform_1(%arg0: i32) -> (i32, i32, i32) {
    %c0_i32 = arith.constant 0 : i32
    %c0_i32_0 = arith.constant 0 : i32
    %c0_i32_1 = arith.constant 0 : i32
    %c0_i32_2 = arith.constant 0 : i32
    return %c0_i32, %c0_i32_0, %c0_i32_1 : i32, i32, i32
  }
  func.func @transform_2(%arg0: i32) -> (i32, i32) {
    %c0_i32 = arith.constant 0 : i32
    %c0_i32_0 = arith.constant 0 : i32
    return %arg0, %c0_i32 : i32, i32
  }
}

</mosaic_0001>

<llo_original>
// kernel: tpu_custom_call.1
$region0: #{tpu_custom_call.1}
  #allocation0 [shape = 'u32[]', space=smem, size = 0x4, offset = 0x4, fixed_abs, tag = 'smem constant byte address 0x4 - core index']
  #allocation1 [shape = 'u32[72,128]{1,0:T(1,128)}', space=vmem, size = 0x9000, scoped, tag = 'internal scratch']
  %s0 = inlined_call_operand.vmem [shape: f32[8,2], index: 0, kind: input, shape index: {}]
  %s1 = inlined_call_operand.hbm [shape: bf16[4,144,128], index: 1, kind: input, shape index: {}]
  %s2 = inlined_call_operand.vmem [shape: f32[8,2], index: 2, kind: output, shape index: {}]
  %s3 = sld [smem:[#allocation0]]
  $region22: #{tpu_custom_call.1} parent=0
    _
  %s5 = ssub.s32 1, %s3
  %s6 = scalar_select 0, %s5, %s3
  $region1: #{tpu_custom_call.1} parent=0
    #allocation2 [shape = 'u8[147456]{0}', space=vmem, size = 0x24000, scoped, tag = 'input window, operand 1, single buffered']
    #allocation3 [shape = 's32[1]{0}', space=sflag, size = 0x4, scoped, tag = 'scoped memory for tpu_custom_call.1']
    %7 = vsyncpa [#allocation3], 0
    // Predicated region
    $region2: #{tpu_custom_call.1} parent=1 // pred_check
      _
    $region3: #{tpu_custom_call.1} parent=1 // pred_check_branch
      %9 = sbr.rel (0) target = $region5
    $region4: #{tpu_custom_call.1} parent=1 // pred_region
      _
    $region5: #{tpu_custom_call.1} parent=1 // pred_fallthru
      _
    // Predicated region
    $region6: #{tpu_custom_call.1} parent=1 // pred_check
      _
    $region7: #{tpu_custom_call.1} parent=1 // pred_check_branch
      %11 = sbr.rel (0) target = $region9
    $region8: #{tpu_custom_call.1} parent=1 // pred_region
      %13 = vsyncadd [#allocation3], 0
      %s14 = sshll.u32 %s1, 4
      %s15 = int_to_ptr.hbm [resolvable:$true] %s14
      %s16 = sshll.u32 [#allocation2], 4
      %s17 = int_to_ptr.vmem [resolvable:$true] %s16
      %22 = dma.hbm_to_vmem [thread:$0]  %s15, 4608, %s17, [#allocation3], 64, 64, 4
    $region9: #{tpu_custom_call.1} parent=1 // pred_fallthru
      _
    // Predicated region
    $region10: #{tpu_custom_call.1} parent=1 // pred_check
      _
    $region11: #{tpu_custom_call.1} parent=1 // pred_check_branch
      %24 = sbr.rel (0) target = $region13
    $region12: #{tpu_custom_call.1} parent=1 // pred_region
      %26 = dma.done [#allocation3], 4608
    $region13: #{tpu_custom_call.1} parent=1 // pred_fallthru
      _
    %v27 = vld [vmem:[%s0] sm:$0xff]
    %v28 = vld [vmem:[#allocation2 + $0x40] sm:$0x1]
    %v29 = vunpack.c.l.bf16 %v28
    %v30 = vld [vmem:[#allocation2] sm:$0xf]
    %v31 = vunpack.c.l.bf16 %v30
    %v32 = vperm.slane %v29, 0
    %34 = vset.pattern.permute.xlu0 0
    %35 = vperm.xlu0 %34, %v27
    %v36 = vpop.permute.xlu0 %35
    %v38 = vperm.slane %v31, 0
    %v39 = vmul.f32 %v36, %v38
    %v40 = vadd.f32 %v32, %v39
    %41 = vset.pattern.permute.xlu0 1
    %42 = vperm.xlu0 %41, %v27
    %v43 = vpop.permute.xlu0 %42
    %v45 = vperm.slane %v31, 1
    %v46 = vmul.f32 %v43, %v45
    %v47 = vadd.f32 %v40, %v46
    %v48 = vmax.f32 %v47, 0.0
    %s49 = scalar_lea.vmem [#allocation2], 72
    %v50 = vld [vmem:[%s49] sm:$0xf]
    %v51 = vld [vmem:[%s49 + $0x4] sm:$0xf]
    %v52 = vld [vmem:[%s49 + $0x8] sm:$0xf]
    %v53 = vld [vmem:[%s49 + $0xc] sm:$0xf]
    %v54 = vld [vmem:[%s49 + $0x10] sm:$0xf]
    %v55 = vld [vmem:[%s49 + $0x14] sm:$0xf]
    %v56 = vld [vmem:[%s49 + $0x18] sm:$0xf]
    %v57 = vld [vmem:[%s49 + $0x1c] sm:$0xf]
    %v58 = vld [vmem:[%s49 + $0x20] sm:$0xf]
    %v59 = vld [vmem:[%s49 + $0x24] sm:$0xf]
    %v60 = vld [vmem:[%s49 + $0x28] sm:$0xf]
    %v61 = vld [vmem:[%s49 + $0x2c] sm:$0xf]
    %v62 = vld [vmem:[%s49 + $0x30] sm:$0xf]
    %v63 = vld [vmem:[%s49 + $0x34] sm:$0xf]
    %v64 = vld [vmem:[%s49 + $0x38] sm:$0xf]
    %v65 = vld [vmem:[%s49 + $0x3c] sm:$0xf]
    %v66 = vld [vmem:[%s49 + $0x40] sm:$0x1]
    %v67 = vunpack.c.l.bf16 %v66
    %v68 = vpack.c.bf16 %v48, %v48
    %v69 = vperm.slane %v67, 0
    %v86 = vunpack.c.l.b16 %v50
    %v87 = vunpack.c.l.b16 %v51
    %v88 = vunpack.c.l.b16 %v52
    %v89 = vunpack.c.l.b16 %v53
    %v90 = vunpack.c.l.b16 %v54
    %v91 = vunpack.c.l.b16 %v55
    %v92 = vunpack.c.l.b16 %v56
    %v93 = vunpack.c.l.b16 %v57
    %v94 = vunpack.c.l.b16 %v58
    %v95 = vunpack.c.l.b16 %v59
    %v96 = vunpack.c.l.b16 %v60
    %v97 = vunpack.c.l.b16 %v61
    %v98 = vunpack.c.l.b16 %v62
    %v99 = vunpack.c.l.b16 %v63
    %v100 = vunpack.c.l.b16 %v64
    %v101 = vunpack.c.l.b16 %v65
    %v102 = vpack.c.b16 %v87, %v86
    %v103 = vpack.c.b16 %v89, %v88
    %v104 = vpack.c.b16 %v91, %v90
    %v105 = vpack.c.b16 %v93, %v92
    %v106 = vpack.c.b16 %v95, %v94
    %v107 = vpack.c.b16 %v97, %v96
    %v108 = vpack.c.b16 %v99, %v98
    %v109 = vpack.c.b16 %v101, %v100
    %118 = vmatpush.bf16.msra.mxu0 %v109
    %119 = vmatpush.bf16.msra.mxu0 %v108
    %120 = vmatpush.bf16.msra.mxu0 %v107
    %121 = vmatpush.bf16.msra.mxu0 %v106
    %122 = vmatpush.bf16.msra.mxu0 %v105
    %123 = vmatpush.bf16.msra.mxu0 %v104
    %124 = vmatpush.bf16.msra.mxu0 %v103
    %125 = vmatpush.bf16.msra.mxu0 %v102
    %126 = vmatmul.bf16.gmra.mxu0 %v68
    %v127 = vpop.f32.mrf.mxu0
    %v128 = vadd.f32 %v69, %v127
    %v129 = vpop.f32.mrf.mxu0
    %130 = vdwg.mxu0
    %v131 = vmax.f32 %v128, 0.0
    %s132 = scalar_lea.vmem [#allocation2], 144
    %v133 = vld [vmem:[%s132] sm:$0xf]
    %v134 = vld [vmem:[%s132 + $0x4] sm:$0xf]
    %v135 = vld [vmem:[%s132 + $0x8] sm:$0xf]
    %v136 = vld [vmem:[%s132 + $0xc] sm:$0xf]
    %v137 = vld [vmem:[%s132 + $0x10] sm:$0xf]
    %v138 = vld [vmem:[%s132 + $0x14] sm:$0xf]
    %v139 = vld [vmem:[%s132 + $0x18] sm:$0xf]
    %v140 = vld [vmem:[%s132 + $0x1c] sm:$0xf]
    %v141 = vld [vmem:[%s132 + $0x20] sm:$0xf]
    %v142 = vld [vmem:[%s132 + $0x24] sm:$0xf]
    %v143 = vld [vmem:[%s132 + $0x28] sm:$0xf]
    %v144 = vld [vmem:[%s132 + $0x2c] sm:$0xf]
    %v145 = vld [vmem:[%s132 + $0x30] sm:$0xf]
    %v146 = vld [vmem:[%s132 + $0x34] sm:$0xf]
    %v147 = vld [vmem:[%s132 + $0x38] sm:$0xf]
    %v148 = vld [vmem:[%s132 + $0x3c] sm:$0xf]
    %v149 = vld [vmem:[%s132 + $0x40] sm:$0x1]
    %v150 = vunpack.c.l.bf16 %v149
    %v151 = vpack.c.bf16 %v131, %v131
    %v152 = vperm.slane %v150, 0
    %v169 = vunpack.c.l.b16 %v133
    %v170 = vunpack.c.l.b16 %v134
    %v171 = vunpack.c.l.b16 %v135
    %v172 = vunpack.c.l.b16 %v136
    %v173 = vunpack.c.l.b16 %v137
    %v174 = vunpack.c.l.b16 %v138
    %v175 = vunpack.c.l.b16 %v139
    %v176 = vunpack.c.l.b16 %v140
    %v177 = vunpack.c.l.b16 %v141
    %v178 = vunpack.c.l.b16 %v142
    %v179 = vunpack.c.l.b16 %v143
    %v180 = vunpack.c.l.b16 %v144
    %v181 = vunpack.c.l.b16 %v145
    %v182 = vunpack.c.l.b16 %v146
    %v183 = vunpack.c.l.b16 %v147
    %v184 = vunpack.c.l.b16 %v148
    %v185 = vpack.c.b16 %v170, %v169
    %v186 = vpack.c.b16 %v172, %v171
    %v187 = vpack.c.b16 %v174, %v173
    %v188 = vpack.c.b16 %v176, %v175
    %v189 = vpack.c.b16 %v178, %v177
    %v190 = vpack.c.b16 %v180, %v179
    %v191 = vpack.c.b16 %v182, %v181
    %v192 = vpack.c.b16 %v184, %v183
    %201 = vmatpush.bf16.msra.mxu0 %v192
    %202 = vmatpush.bf16.msra.mxu0 %v191
    %203 = vmatpush.bf16.msra.mxu0 %v190
    %204 = vmatpush.bf16.msra.mxu0 %v189
    %205 = vmatpush.bf16.msra.mxu0 %v188
    %206 = vmatpush.bf16.msra.mxu0 %v187
    %207 = vmatpush.bf16.msra.mxu0 %v186
    %208 = vmatpush.bf16.msra.mxu0 %v185
    %209 = vmatmul.bf16.gmra.mxu0 %v151
    %v210 = vpop.f32.mrf.mxu0
    %v211 = vadd.f32 %v152, %v210
    %v212 = vpop.f32.mrf.mxu0
    %213 = vdwg.mxu0
    %v214 = vmax.f32 %v211, 0.0
    %s215 = scalar_lea.vmem [#allocation2], 216
    %v216 = vld [vmem:[%s215] sm:$0xf]
    %v217 = vld [vmem:[%s215 + $0x4] sm:$0xf]
    %v218 = vld [vmem:[%s215 + $0x8] sm:$0xf]
    %v219 = vld [vmem:[%s215 + $0xc] sm:$0xf]
    %v220 = vld [vmem:[%s215 + $0x10] sm:$0xf]
    %v221 = vld [vmem:[%s215 + $0x14] sm:$0xf]
    %v222 = vld [vmem:[%s215 + $0x18] sm:$0xf]
    %v223 = vld [vmem:[%s215 + $0x1c] sm:$0xf]
    %v224 = vld [vmem:[%s215 + $0x20] sm:$0xf]
    %v225 = vld [vmem:[%s215 + $0x24] sm:$0xf]
    %v226 = vld [vmem:[%s215 + $0x28] sm:$0xf]
    %v227 = vld [vmem:[%s215 + $0x2c] sm:$0xf]
    %v228 = vld [vmem:[%s215 + $0x30] sm:$0xf]
    %v229 = vld [vmem:[%s215 + $0x34] sm:$0xf]
    %v230 = vld [vmem:[%s215 + $0x38] sm:$0xf]
    %v231 = vld [vmem:[%s215 + $0x3c] sm:$0xf]
    %v232 = vld [vmem:[%s215 + $0x40] sm:$0x1]
    %v233 = vunpack.c.l.bf16 %v232
    %v234 = vpack.c.bf16 %v214, %v214
    %v235 = vperm.slane %v233, 0
    %v252 = vunpack.c.l.b16 %v216
    %v253 = vunpack.c.l.b16 %v217
    %v254 = vunpack.c.l.b16 %v218
    %v255 = vunpack.c.l.b16 %v219
    %v256 = vunpack.c.l.b16 %v220
    %v257 = vunpack.c.l.b16 %v221
    %v258 = vunpack.c.l.b16 %v222
    %v259 = vunpack.c.l.b16 %v223
    %v260 = vunpack.c.l.b16 %v224
    %v261 = vunpack.c.l.b16 %v225
    %v262 = vunpack.c.l.b16 %v226
    %v263 = vunpack.c.l.b16 %v227
    %v264 = vunpack.c.l.b16 %v228
    %v265 = vunpack.c.l.b16 %v229
    %v266 = vunpack.c.l.b16 %v230
    %v267 = vunpack.c.l.b16 %v231
    %v268 = vpack.c.b16 %v253, %v252
    %v269 = vpack.c.b16 %v255, %v254
    %v270 = vpack.c.b16 %v257, %v256
    %v271 = vpack.c.b16 %v259, %v258
    %v272 = vpack.c.b16 %v261, %v260
    %v273 = vpack.c.b16 %v263, %v262
    %v274 = vpack.c.b16 %v265, %v264
    %v275 = vpack.c.b16 %v267, %v266
    %284 = vmatpush.bf16.msra.mxu0 %v275
    %285 = vmatpush.bf16.msra.mxu0 %v274
    %286 = vmatpush.bf16.msra.mxu0 %v273
    %287 = vmatpush.bf16.msra.mxu0 %v272
    %288 = vmatpush.bf16.msra.mxu0 %v271
    %289 = vmatpush.bf16.msra.mxu0 %v270
    %290 = vmatpush.bf16.msra.mxu0 %v269
    %291 = vmatpush.bf16.msra.mxu0 %v268
    %292 = vmatmul.bf16.gmra.mxu0 %v234
    %v293 = vpop.f32.mrf.mxu0
    %v294 = vadd.f32 %v235, %v293
    %v295 = vpop.f32.mrf.mxu0
    %296 = vdwg.mxu0
    %vm297 = vcmask 15360
    %298 = vst.msk [vmem:[%s2] sm:$0xff] %vm297, %v294
    // Predicated region
    $region14: #{tpu_custom_call.1} parent=1 // pred_check
      _
    $region15: #{tpu_custom_call.1} parent=1 // pred_check_branch
      %300 = sbr.rel (0) target = $region17
    $region16: #{tpu_custom_call.1} parent=1 // pred_region
      _
    $region17: #{tpu_custom_call.1} parent=1 // pred_fallthru
      _
    // Predicated region
    $region18: #{tpu_custom_call.1} parent=1 // pred_check
      _
    $region19: #{tpu_custom_call.1} parent=1 // pred_check_branch
      %302 = sbr.rel (0) target = $region21
    $region20: #{tpu_custom_call.1} parent=1 // pred_region
      _
    $region21: #{tpu_custom_call.1} parent=1 // pred_fallthru
      _
    %303 = vsyncpa [#allocation3], 1

</llo_original>
